<compile_context>
chip_gen: v7x
topology: tpu7x:2x2x1
jax: 0.10.0
libtpu: 0.0.40
codegen_flags: <defaults>
</compile_context>

<pallas_src>
import numpy as np
import jax
import jax.numpy as jnp
from jax.experimental import pallas as pl
from jax.experimental.pallas import tpu as pltpu


def critic_kernel(st_ref, ac_ref, w1s_ref, w1a_ref, b1_ref,
                  w2_ref, b2_ref, w3_ref, b3_ref, o_ref):
    # st: (S, TB) bf16, ac: (A, TB) bf16  -- batch on lanes.
    # w1s: (Hp, S) bf16, w1a: (Hp, A) bf16, w2: (Hp, Hp) bf16  (PyTorch-native (out, in)).
    # b1, b2, w3: (Hp, 1) f32;  b3: (1, 1) f32;  o: (1, TB) f32.

    # Layer 1: relu(W1 @ [s; a] + b1), concat eliminated via split weights.
    h1 = jnp.dot(w1s_ref[...], st_ref[...], preferred_element_type=jnp.float32)
    h1 = h1 + jnp.dot(w1a_ref[...], ac_ref[...], preferred_element_type=jnp.float32)
    h1 = jnp.maximum(h1 + b1_ref[...], 0.0)                       # (Hp, TB) f32

    # Layer 2: relu(W2 @ h1 + b2); matmul operands in bf16, f32 accumulation.
    h2 = jnp.dot(w2_ref[...], h1.astype(jnp.bfloat16),
                 preferred_element_type=jnp.float32)
    h2 = jnp.maximum(h2 + b2_ref[...], 0.0)                       # (Hp, TB) f32

    # Layer 3: N=1 output -> VPU multiply + cross-sublane (XLU) reduction, no MXU pass.
    q = jnp.sum(w3_ref[...] * h2, axis=0, keepdims=True) + b3_ref[...]
    o_ref[...] = q.astype(o_ref.dtype)                            # (1, TB)


def prepare_critic_params(params, state_size, action_size):
    """PyTorch-native params -> kernel layout: split W1, pad hidden to 128, cast matmul
    operands to bf16 (biases / W3 stay f32 for the f32 elementwise path)."""
    w1, b1, w2, b2, w3, b3 = params
    H = w1.shape[0]
    Hp = ((H + 127) // 128) * 128
    pad = Hp - H

    w1s = jnp.pad(w1[:, :state_size], ((0, pad), (0, 0))).astype(jnp.bfloat16)   # (Hp, S)
    w1a = jnp.pad(w1[:, state_size:], ((0, pad), (0, 0))).astype(jnp.bfloat16)   # (Hp, A)
    b1p = jnp.pad(b1, (0, pad)).reshape(Hp, 1).astype(jnp.float32)
    w2p = jnp.pad(w2, ((0, pad), (0, pad))).astype(jnp.bfloat16)                 # (Hp, Hp)
    b2p = jnp.pad(b2, (0, pad)).reshape(Hp, 1).astype(jnp.float32)
    w3p = jnp.pad(w3.reshape(-1), (0, pad)).reshape(Hp, 1).astype(jnp.float32)
    b3p = b3.reshape(1, 1).astype(jnp.float32)
    return (w1s, w1a, b1p, w2p, b2p, w3p, b3p)


def critic_forward(state, action, kparams, *, tb=512):
    """state: (B, S) f32, action: (B, A) f32; returns q: (B, 1) f32."""
    w1s, w1a, b1, w2, b2, w3, b3 = kparams
    B, S = state.shape
    A = action.shape[1]

    # Batch tile: multiple of 128 lanes; don't over-pad tiny batches.
    tb = max(128, min(int(tb), pl.cdiv(B, 128) * 128))
    n_tiles = pl.cdiv(B, tb)
    Bp = n_tiles * tb

    def lane_major(x):
        # (B, F) f32 -> (F, Bp) bf16, batch on lanes (transpose+cast+pad fuse in XLA).
        xt = jnp.transpose(x).astype(jnp.bfloat16)
        return jnp.pad(xt, ((0, 0), (0, Bp - x.shape[0])))

    st_t = lane_major(state)      # (S, Bp)
    ac_t = lane_major(action)     # (A, Bp)

    batch_tile = lambda rows: pl.BlockSpec((rows, tb), lambda i: (0, i))
    resident = lambda a: pl.BlockSpec(a.shape, lambda i: (0, 0))   # VMEM-resident weights

    q_t = pl.pallas_call(
        critic_kernel,
        out_shape=jax.ShapeDtypeStruct((1, Bp), jnp.float32),
        grid=(n_tiles,),
        in_specs=[batch_tile(S), batch_tile(A),
                  resident(w1s), resident(w1a), resident(b1),
                  resident(w2), resident(b2),
                  resident(w3), resident(b3)],
        out_specs=pl.BlockSpec((1, tb), lambda i: (0, i)),
        compiler_params=pltpu.CompilerParams(
            dimension_semantics=("parallel",)),
    )(st_t, ac_t, w1s, w1a, b1, w2, b2, w3, b3)

    return q_t[0, :B][:, None]    # back to (B, 1); padded batch rows dropped


def init_critic_params(key, state_size, action_size, hidden_size=64):
    """PyTorch-shaped params: w (out, in), b (out,). Mimics Critic.reset_parameters
    (hidden_init quirk uses out_features as fan_in); biases use nn.Linear defaults."""
    d_in = state_size + action_size
    k = jax.random.split(key, 6)

    def u(kk, shape, lim):
        return jax.random.uniform(kk, shape, jnp.float32, -lim, lim)

    lim_h = 1.0 / np.sqrt(hidden_size)
    w1 = u(k[0], (hidden_size, d_in), lim_h)
    b1 = u(k[1], (hidden_size,), 1.0 / np.sqrt(d_in))
    w2 = u(k[2], (hidden_size, hidden_size), lim_h)
    b2 = u(k[3], (hidden_size,), 1.0 / np.sqrt(hidden_size))
    w3 = u(k[4], (1, hidden_size), 0.003)
    b3 = u(k[5], (1,), 1.0 / np.sqrt(hidden_size))
    return (w1, b1, w2, b2, w3, b3)


def critic_ref(state, action, params):
    """Pure-JAX f32 reference with PyTorch-native weights."""
    w1, b1, w2, b2, w3, b3 = params
    x = jnp.concatenate([state, action], axis=1)
    h1 = jax.nn.relu(x @ w1.T + b1)
    h2 = jax.nn.relu(h1 @ w2.T + b2)
    return h2 @ w3.T + b3


if __name__ == "__main__":
    key = jax.random.PRNGKey(0)
    k_state, k_action, k_params = jax.random.split(key, 3)

    batch, state_size, action_size, hidden_size = 8, 12, 4, 32
    state = jax.random.normal(k_state, (batch, state_size), jnp.float32)
    action = jax.random.normal(k_action, (batch, action_size), jnp.float32)

    params = init_critic_params(k_params, state_size, action_size, hidden_size)
    kparams = prepare_critic_params(params, state_size, action_size)

    q = jax.jit(critic_forward)(state, action, kparams)
    q = jax.block_until_ready(q)

    q_ref = critic_ref(state, action, params)
    # bf16 matmul operands -> loosened tolerance (f32 accumulation keeps error ~1e-3).
    np.testing.assert_allclose(np.asarray(q), np.asarray(q_ref), rtol=2e-2, atol=2e-2)
    assert q.shape == (batch, 1)
    print("KERNEL_OK")
</pallas_src>

<mosaic_0001>
module attributes {stable_mosaic.version = 11 : i64} {
  func.func @critic_kernel(%arg0: i32, %arg1: memref<12x128xbf16, #tpu.memory_space<vmem>>, %arg2: memref<4x128xbf16, #tpu.memory_space<vmem>>, %arg3: memref<128x12xbf16, #tpu.memory_space<vmem>>, %arg4: memref<128x4xbf16, #tpu.memory_space<vmem>>, %arg5: memref<128x1xf32, #tpu.memory_space<vmem>>, %arg6: memref<128x128xbf16, #tpu.memory_space<vmem>>, %arg7: memref<128x1xf32, #tpu.memory_space<vmem>>, %arg8: memref<128x1xf32, #tpu.memory_space<vmem>>, %arg9: memref<1x1xf32, #tpu.memory_space<vmem>>, %arg10: memref<1x128xf32, #tpu.memory_space<vmem>>) attributes {dimension_semantics = [#tpu.dimension_semantics<parallel>], iteration_bounds = array<i64: 1>, scalar_prefetch = 0 : i64, scratch_operands = 0 : i64, tpu.core_type = #tpu.core_type<tc>, window_params = [{transform_indices = @transform_0, window_bounds = array<i64: 12, 128>}, {transform_indices = @transform_1, window_bounds = array<i64: 4, 128>}, {pipeline_mode = #tpu.pipeline_mode<synchronous>, transform_indices = @transform_2, window_bounds = array<i64: 128, 12>}, {pipeline_mode = #tpu.pipeline_mode<synchronous>, transform_indices = @transform_3, window_bounds = array<i64: 128, 4>}, {pipeline_mode = #tpu.pipeline_mode<synchronous>, transform_indices = @transform_4, window_bounds = array<i64: 128, 1>}, {pipeline_mode = #tpu.pipeline_mode<synchronous>, transform_indices = @transform_5, window_bounds = array<i64: 128, 128>}, {pipeline_mode = #tpu.pipeline_mode<synchronous>, transform_indices = @transform_6, window_bounds = array<i64: 128, 1>}, {pipeline_mode = #tpu.pipeline_mode<synchronous>, transform_indices = @transform_7, window_bounds = array<i64: 128, 1>}, {pipeline_mode = #tpu.pipeline_mode<synchronous>, transform_indices = @transform_8, window_bounds = array<i64: 1, 1>}, {transform_indices = @transform_9, window_bounds = array<i64: 1, 128>}]} {
    %c0 = arith.constant 0 : index
    %c0_0 = arith.constant 0 : index
    %0 = vector.load %arg3[%c0, %c0_0] : memref<128x12xbf16, #tpu.memory_space<vmem>>, vector<128x12xbf16>
    %c0_1 = arith.constant 0 : index
    %c0_2 = arith.constant 0 : index
    %1 = vector.load %arg1[%c0_1, %c0_2] : memref<12x128xbf16, #tpu.memory_space<vmem>>, vector<12x128xbf16>
    %cst = arith.constant dense<0.000000e+00> : vector<128x128xf32>
    %2 = tpu.matmul %0, %1, %cst {dimension_numbers = #tpu.dot_dimension_numbers<[1], [0], [0], [1], [0, 0, 1, 1], [], []>} : vector<128x12xbf16>, vector<12x128xbf16>, vector<128x128xf32> -> vector<128x128xf32>
    %c0_3 = arith.constant 0 : index
    %c0_4 = arith.constant 0 : index
    %3 = vector.load %arg4[%c0_3, %c0_4] : memref<128x4xbf16, #tpu.memory_space<vmem>>, vector<128x4xbf16>
    %c0_5 = arith.constant 0 : index
    %c0_6 = arith.constant 0 : index
    %4 = vector.load %arg2[%c0_5, %c0_6] : memref<4x128xbf16, #tpu.memory_space<vmem>>, vector<4x128xbf16>
    %cst_7 = arith.constant dense<0.000000e+00> : vector<128x128xf32>
    %5 = tpu.matmul %3, %4, %cst_7 {dimension_numbers = #tpu.dot_dimension_numbers<[1], [0], [0], [1], [0, 0, 1, 1], [], []>} : vector<128x4xbf16>, vector<4x128xbf16>, vector<128x128xf32> -> vector<128x128xf32>
    %6 = arith.addf %2, %5 : vector<128x128xf32>
    %c0_8 = arith.constant 0 : index
    %c0_9 = arith.constant 0 : index
    %7 = vector.load %arg5[%c0_8, %c0_9] : memref<128x1xf32, #tpu.memory_space<vmem>>, vector<128x1xf32>
    %8 = vector.broadcast %7 : vector<128x1xf32> to vector<128x128xf32>
    %9 = arith.addf %6, %8 : vector<128x128xf32>
    %cst_10 = arith.constant 0.000000e+00 : f32
    %10 = vector.broadcast %cst_10 : f32 to vector<128x128xf32>
    %11 = arith.maximumf %9, %10 : vector<128x128xf32>
    %c0_11 = arith.constant 0 : index
    %c0_12 = arith.constant 0 : index
    %12 = vector.load %arg6[%c0_11, %c0_12] : memref<128x128xbf16, #tpu.memory_space<vmem>>, vector<128x128xbf16>
    %13 = arith.truncf %11 : vector<128x128xf32> to vector<128x128xbf16>
    %cst_13 = arith.constant dense<0.000000e+00> : vector<128x128xf32>
    %14 = tpu.matmul %12, %13, %cst_13 {dimension_numbers = #tpu.dot_dimension_numbers<[1], [0], [0], [1], [0, 0, 1, 1], [], []>} : vector<128x128xbf16>, vector<128x128xbf16>, vector<128x128xf32> -> vector<128x128xf32>
    %c0_14 = arith.constant 0 : index
    %c0_15 = arith.constant 0 : index
    %15 = vector.load %arg7[%c0_14, %c0_15] : memref<128x1xf32, #tpu.memory_space<vmem>>, vector<128x1xf32>
    %16 = vector.broadcast %15 : vector<128x1xf32> to vector<128x128xf32>
    %17 = arith.addf %14, %16 : vector<128x128xf32>
    %cst_16 = arith.constant 0.000000e+00 : f32
    %18 = vector.broadcast %cst_16 : f32 to vector<128x128xf32>
    %19 = arith.maximumf %17, %18 : vector<128x128xf32>
    %c0_17 = arith.constant 0 : index
    %c0_18 = arith.constant 0 : index
    %20 = vector.load %arg8[%c0_17, %c0_18] : memref<128x1xf32, #tpu.memory_space<vmem>>, vector<128x1xf32>
    %21 = vector.broadcast %20 : vector<128x1xf32> to vector<128x128xf32>
    %22 = arith.mulf %21, %19 : vector<128x128xf32>
    %cst_19 = arith.constant dense<0.000000e+00> : vector<128xf32>
    %23 = vector.multi_reduction <add>, %22, %cst_19 [0] : vector<128x128xf32> to vector<128xf32>
    %24 = vector.shape_cast %23 : vector<128xf32> to vector<1x128xf32>
    %c0_20 = arith.constant 0 : index
    %c0_21 = arith.constant 0 : index
    %25 = vector.load %arg9[%c0_20, %c0_21] : memref<1x1xf32, #tpu.memory_space<vmem>>, vector<1x1xf32>
    %26 = vector.broadcast %25 : vector<1x1xf32> to vector<1x128xf32>
    %27 = arith.addf %24, %26 : vector<1x128xf32>
    %c0_22 = arith.constant 0 : index
    %c0_23 = arith.constant 0 : index
    %28 = vector.load %arg10[%c0_22, %c0_23] : memref<1x128xf32, #tpu.memory_space<vmem>>, vector<1x128xf32>
    tpu.vector_store %arg10[%c0_22, %c0_23], %27 {strides = array<i32>} : memref<1x128xf32, #tpu.memory_space<vmem>>, vector<1x128xf32>,
    return
  }
  func.func @transform_0(%arg0: i32) -> (i32, i32) {
    %c0_i32 = arith.constant 0 : i32
    %c0_i32_0 = arith.constant 0 : i32
    return %c0_i32, %arg0 : i32, i32
  }
  func.func @transform_1(%arg0: i32) -> (i32, i32) {
    %c0_i32 = arith.constant 0 : i32
    %c0_i32_0 = arith.constant 0 : i32
    return %c0_i32, %arg0 : i32, i32
  }
  func.func @transform_2(%arg0: i32) -> (i32, i32) {
    %c0_i32 = arith.constant 0 : i32
    %c0_i32_0 = arith.constant 0 : i32
    %c0_i32_1 = arith.constant 0 : i32
    return %c0_i32, %c0_i32_0 : i32, i32
  }
  func.func @transform_3(%arg0: i32) -> (i32, i32) {
    %c0_i32 = arith.constant 0 : i32
    %c0_i32_0 = arith.constant 0 : i32
    %c0_i32_1 = arith.constant 0 : i32
    return %c0_i32, %c0_i32_0 : i32, i32
  }
  func.func @transform_4(%arg0: i32) -> (i32, i32) {
    %c0_i32 = arith.constant 0 : i32
    %c0_i32_0 = arith.constant 0 : i32
    %c0_i32_1 = arith.constant 0 : i32
    return %c0_i32, %c0_i32_0 : i32, i32
  }
  func.func @transform_5(%arg0: i32) -> (i32, i32) {
    %c0_i32 = arith.constant 0 : i32
    %c0_i32_0 = arith.constant 0 : i32
    %c0_i32_1 = arith.constant 0 : i32
    return %c0_i32, %c0_i32_0 : i32, i32
  }
  func.func @transform_6(%arg0: i32) -> (i32, i32) {
    %c0_i32 = arith.constant 0 : i32
    %c0_i32_0 = arith.constant 0 : i32
    %c0_i32_1 = arith.constant 0 : i32
    return %c0_i32, %c0_i32_0 : i32, i32
  }
  func.func @transform_7(%arg0: i32) -> (i32, i32) {
    %c0_i32 = arith.constant 0 : i32
    %c0_i32_0 = arith.constant 0 : i32
    %c0_i32_1 = arith.constant 0 : i32
    return %c0_i32, %c0_i32_0 : i32, i32
  }
  func.func @transform_8(%arg0: i32) -> (i32, i32) {
    %c0_i32 = arith.constant 0 : i32
    %c0_i32_0 = arith.constant 0 : i32
    %c0_i32_1 = arith.constant 0 : i32
    return %c0_i32, %c0_i32_0 : i32, i32
  }
  func.func @transform_9(%arg0: i32) -> (i32, i32) {
    %c0_i32 = arith.constant 0 : i32
    %c0_i32_0 = arith.constant 0 : i32
    return %c0_i32, %arg0 : i32, i32
  }
}

</mosaic_0001>

<llo_original>
// kernel: critic_forward.1
$region0: #{critic_forward.1}
  #allocation0 [shape = 'u32[]', space=smem, size = 0x4, offset = 0x4, fixed_abs, tag = 'smem constant byte address 0x4 - core index']
  #allocation1 [shape = 'u32[144,128]{1,0:T(1,128)}', space=vmem, size = 0x12000, scoped, tag = 'internal scratch']
  #allocation2 [shape = 'f32[1,1]{1,0:T(1,128)S(1)}', space=vmem, size = 0x200, scoped, tag = 'scoped memory for critic_forward.1']
  %s0 = inlined_call_operand.vmem [shape: bf16[12,128], index: 0, kind: input, shape index: {}]
  %s1 = inlined_call_operand.vmem [shape: bf16[4,128], index: 1, kind: input, shape index: {}]
  %s2 = inlined_call_operand.vmem [shape: bf16[128,12], index: 2, kind: input, shape index: {}]
  %s3 = inlined_call_operand.vmem [shape: bf16[128,4], index: 3, kind: input, shape index: {}]
  %s4 = inlined_call_operand.vmem [shape: f32[128,1], index: 4, kind: input, shape index: {}]
  %s5 = inlined_call_operand.vmem [shape: bf16[128,128], index: 5, kind: input, shape index: {}]
  %s6 = inlined_call_operand.vmem [shape: f32[128,1], index: 6, kind: input, shape index: {}]
  %s7 = inlined_call_operand.vmem [shape: f32[128,1], index: 7, kind: input, shape index: {}]
  %s8 = inlined_call_operand.<no memory space> [shape: f32[1,1], index: 8, kind: input, shape index: {}]
  %s9 = inlined_call_operand.vmem [shape: f32[1,128], index: 9, kind: output, shape index: {}]
  %s10 = sld [smem:[#allocation0]]
  $region46: #{critic_forward.1} parent=0
    _
  %s12 = ssub.s32 1, %s10
  %s13 = scalar_select 0, %s12, %s10
  %v14 = vstv %s8
  %15 = vst [vmem:[#allocation2] sm:$0x1] %v14
  // Predicated region
  $region2: #{critic_forward.1} parent=0 // pred_check
    _
  $region3: #{critic_forward.1} parent=0 // pred_check_branch
    %17 = sbr.rel (0) target = $region5
  $region4: #{critic_forward.1} parent=0 // pred_region
    _
  $region5: #{critic_forward.1} parent=0 // pred_fallthru
    _
  // Predicated region
  $region6: #{critic_forward.1} parent=0 // pred_check
    _
  $region7: #{critic_forward.1} parent=0 // pred_check_branch
    %19 = sbr.rel (0) target = $region9
  $region8: #{critic_forward.1} parent=0 // pred_region
    _
  $region9: #{critic_forward.1} parent=0 // pred_fallthru
    _
  // Predicated region
  $region10: #{critic_forward.1} parent=0 // pred_check
    _
  $region11: #{critic_forward.1} parent=0 // pred_check_branch
    %21 = sbr.rel (0) target = $region13
  $region12: #{critic_forward.1} parent=0 // pred_region
    _
  $region13: #{critic_forward.1} parent=0 // pred_fallthru
    _
  // Predicated region
  $region14: #{critic_forward.1} parent=0 // pred_check
    _
  $region15: #{critic_forward.1} parent=0 // pred_check_branch
    %23 = sbr.rel (0) target = $region17
  $region16: #{critic_forward.1} parent=0 // pred_region
    _
  $region17: #{critic_forward.1} parent=0 // pred_fallthru
    _
  // Predicated region
  $region18: #{critic_forward.1} parent=0 // pred_check
    _
  $region19: #{critic_forward.1} parent=0 // pred_check_branch
    %25 = sbr.rel (0) target = $region21
  $region20: #{critic_forward.1} parent=0 // pred_region
    _
  $region21: #{critic_forward.1} parent=0 // pred_fallthru
    _
  // Predicated region
  $region22: #{critic_forward.1} parent=0 // pred_check
    _
  $region23: #{critic_forward.1} parent=0 // pred_check_branch
    %27 = sbr.rel (0) target = $region25
  $region24: #{critic_forward.1} parent=0 // pred_region
    _
  $region25: #{critic_forward.1} parent=0 // pred_fallthru
    _
  // Predicated region
  $region26: #{critic_forward.1} parent=0 // pred_check
    _
  $region27: #{critic_forward.1} parent=0 // pred_check_branch
    %29 = sbr.rel (0) target = $region29
  $region28: #{critic_forward.1} parent=0 // pred_region
    _
  $region29: #{critic_forward.1} parent=0 // pred_fallthru
    _
  // Predicated region
  $region30: #{critic_forward.1} parent=0 // pred_check
    _
  $region31: #{critic_forward.1} parent=0 // pred_check_branch
    %31 = sbr.rel (0) target = $region33
  $region32: #{critic_forward.1} parent=0 // pred_region
    _
  $region33: #{critic_forward.1} parent=0 // pred_fallthru
    _
  // Predicated region
  $region34: #{critic_forward.1} parent=0 // pred_check
    _
  $region35: #{critic_forward.1} parent=0 // pred_check_branch
    %33 = sbr.rel (0) target = $region37
  $region36: #{critic_forward.1} parent=0 // pred_region
    _
  $region37: #{critic_forward.1} parent=0 // pred_fallthru
    _
  %v35 = vld [vmem:[%s2] sm:$0xf]
  %v36 = vld [vmem:[%s2 + $0x4] sm:$0xf]
  %v37 = vld [vmem:[%s2 + $0x8] sm:$0xf]
  %v38 = vld [vmem:[%s2 + $0xc] sm:$0xf]
  %v39 = vld [vmem:[%s2 + $0x10] sm:$0xf]
  %v40 = vld [vmem:[%s2 + $0x14] sm:$0xf]
  %v41 = vld [vmem:[%s2 + $0x18] sm:$0xf]
  %v42 = vld [vmem:[%s2 + $0x1c] sm:$0xf]
  %v43 = vld [vmem:[%s2 + $0x20] sm:$0xf]
  %v44 = vld [vmem:[%s2 + $0x24] sm:$0xf]
  %v45 = vld [vmem:[%s2 + $0x28] sm:$0xf]
  %v46 = vld [vmem:[%s2 + $0x2c] sm:$0xf]
  %v47 = vld [vmem:[%s2 + $0x30] sm:$0xf]
  %v48 = vld [vmem:[%s2 + $0x34] sm:$0xf]
  %v49 = vld [vmem:[%s2 + $0x38] sm:$0xf]
  %v50 = vld [vmem:[%s2 + $0x3c] sm:$0xf]
  %v51 = vld [vmem:[%s0] sm:$0xf]
  %v52 = vld [vmem:[%s0 + $0x4] sm:$0x3]
  %v53 = vld [vmem:[%s3] sm:$0xf]
  %v54 = vld [vmem:[%s3 + $0x4] sm:$0xf]
  %v55 = vld [vmem:[%s3 + $0x8] sm:$0xf]
  %v56 = vld [vmem:[%s3 + $0xc] sm:$0xf]
  %v57 = vld [vmem:[%s3 + $0x10] sm:$0xf]
  %v58 = vld [vmem:[%s3 + $0x14] sm:$0xf]
  %v59 = vld [vmem:[%s3 + $0x18] sm:$0xf]
  %v60 = vld [vmem:[%s3 + $0x1c] sm:$0xf]
  %v61 = vld [vmem:[%s3 + $0x20] sm:$0xf]
  %v62 = vld [vmem:[%s3 + $0x24] sm:$0xf]
  %v63 = vld [vmem:[%s3 + $0x28] sm:$0xf]
  %v64 = vld [vmem:[%s3 + $0x2c] sm:$0xf]
  %v65 = vld [vmem:[%s3 + $0x30] sm:$0xf]
  %v66 = vld [vmem:[%s3 + $0x34] sm:$0xf]
  %v67 = vld [vmem:[%s3 + $0x38] sm:$0xf]
  %v68 = vld [vmem:[%s3 + $0x3c] sm:$0xf]
  %v69 = vld [vmem:[%s1] sm:$0x3]
  %v86 = vunpack.c.l.b16 %v53
  %v87 = vunpack.c.l.b16 %v54
  %v88 = vunpack.c.l.b16 %v55
  %v89 = vunpack.c.l.b16 %v56
  %v90 = vunpack.c.l.b16 %v57
  %v91 = vunpack.c.l.b16 %v58
  %v92 = vunpack.c.l.b16 %v59
  %v93 = vunpack.c.l.b16 %v60
  %v94 = vunpack.c.l.b16 %v61
  %v95 = vunpack.c.l.b16 %v62
  %v96 = vunpack.c.l.b16 %v63
  %v97 = vunpack.c.l.b16 %v64
  %v98 = vunpack.c.l.b16 %v65
  %v99 = vunpack.c.l.b16 %v66
  %v100 = vunpack.c.l.b16 %v67
  %v101 = vunpack.c.l.b16 %v68
  %v102 = vpack.c.b16 %v87, %v86
  %v103 = vpack.c.b16 %v89, %v88
  %v104 = vpack.c.b16 %v91, %v90
  %v105 = vpack.c.b16 %v93, %v92
  %v106 = vpack.c.b16 %v95, %v94
  %v107 = vpack.c.b16 %v97, %v96
  %v108 = vpack.c.b16 %v99, %v98
  %v109 = vpack.c.b16 %v101, %v100
  %vm110 = vcmask 31744
  %v112 = vsel %vm110, %v102, 0
  %v115 = vsel %vm110, %v103, 0
  %v118 = vsel %vm110, %v104, 0
  %v121 = vsel %vm110, %v105, 0
  %v124 = vsel %vm110, %v106, 0
  %v127 = vsel %vm110, %v107, 0
  %v130 = vsel %vm110, %v108, 0
  %v133 = vsel %vm110, %v109, 0
  %vm135 = vcmask 1041408
  %v137 = vsel %vm135, %v69, 0
  %139 = vmatprep.subr.bf16.mxu0 0
  %140 = vmatpush1.bf16.msra.mxu0 %v137
  %141 = vmatprep.subr.bf16.mxu0 0
  %142 = vmatpush1.bf16.msra.mxu0 0
  %143 = vmatprep.subr.bf16.mxu0 0
  %144 = vmatpush1.bf16.msra.mxu0 0
  %145 = vmatprep.subr.bf16.mxu0 0
  %146 = vmatpush1.bf16.msra.mxu0 0
  %147 = vmatprep.subr.bf16.mxu0 0
  %148 = vmatpush1.bf16.msra.mxu0 0
  %149 = vmatprep.subr.bf16.mxu0 0
  %150 = vmatpush1.bf16.msra.mxu0 0
  %151 = vmatprep.subr.bf16.mxu0 0
  %152 = vmatpush1.bf16.msra.mxu0 0
  %153 = vmatprep.subr.bf16.mxu0 0
  %154 = vmatpush1.bf16.msra.mxu0 0
  %155 = vmatprep.subr.bf16.mxu0 0
  %156 = vmatpush1.bf16.msra.mxu0 0
  %157 = vmatprep.subr.bf16.mxu0 0
  %158 = vmatpush1.bf16.msra.mxu0 0
  %159 = vmatprep.subr.bf16.mxu0 0
  %160 = vmatpush1.bf16.msra.mxu0 0
  %161 = vmatprep.subr.bf16.mxu0 0
  %162 = vmatpush1.bf16.msra.mxu0 0
  %163 = vmatprep.subr.bf16.mxu0 0
  %164 = vmatpush1.bf16.msra.mxu0 0
  %165 = vmatprep.subr.bf16.mxu0 0
  %166 = vmatpush1.bf16.msra.mxu0 0
  %167 = vmatprep.subr.bf16.mxu0 0
  %168 = vmatpush1.bf16.msra.mxu0 0
  %169 = vmatprep.subr.bf16.mxu0 0
  %170 = vmatpush1.bf16.msra.mxu0 0
  %171 = vmatprep.mubr.bf16.mxu0 0
  %172 = vmatmul.mubr.bf16.gmra.mrb[0].mxu0 %v112
  %v173 = vpop.f32.mrb[0].mxu0
  %v174 = vadd.f32 0.0, %v173
  %v175 = vpop.f32.mrb[0].mxu0
  %v176 = vpop.f32.mrb[0].mxu0
  %v177 = vadd.f32 0.0, %v176
  %v178 = vpop.f32.mrb[0].mxu0
  %179 = vmatprep.mubr.bf16.mxu0 0
  %180 = vmatmul.mubr.bf16.gmra.mrb[0].mxu0 %v115
  %v181 = vpop.f32.mrb[0].mxu0
  %v182 = vadd.f32 0.0, %v181
  %v183 = vpop.f32.mrb[0].mxu0
  %v184 = vpop.f32.mrb[0].mxu0
  %v185 = vadd.f32 0.0, %v184
  %v186 = vpop.f32.mrb[0].mxu0
  %187 = vmatprep.mubr.bf16.mxu0 0
  %188 = vmatmul.mubr.bf16.gmra.mrb[0].mxu0 %v118
  %v189 = vpop.f32.mrb[0].mxu0
  %v190 = vadd.f32 0.0, %v189
  %v191 = vpop.f32.mrb[0].mxu0
  %v192 = vpop.f32.mrb[0].mxu0
  %v193 = vadd.f32 0.0, %v192
  %v194 = vpop.f32.mrb[0].mxu0
  %195 = vmatprep.mubr.bf16.mxu0 0
  %196 = vmatmul.mubr.bf16.gmra.mrb[0].mxu0 %v121
  %v197 = vpop.f32.mrb[0].mxu0
  %v198 = vadd.f32 0.0, %v197
  %v199 = vpop.f32.mrb[0].mxu0
  %v200 = vpop.f32.mrb[0].mxu0
  %v201 = vadd.f32 0.0, %v200
  %v202 = vpop.f32.mrb[0].mxu0
  %203 = vmatprep.mubr.bf16.mxu0 0
  %204 = vmatmul.mubr.bf16.gmra.mrb[0].mxu0 %v124
  %v205 = vpop.f32.mrb[0].mxu0
  %v206 = vadd.f32 0.0, %v205
  %v207 = vpop.f32.mrb[0].mxu0
  %v208 = vpop.f32.mrb[0].mxu0
  %v209 = vadd.f32 0.0, %v208
  %v210 = vpop.f32.mrb[0].mxu0
  %211 = vmatprep.mubr.bf16.mxu0 0
  %212 = vmatmul.mubr.bf16.gmra.mrb[0].mxu0 %v127
  %v213 = vpop.f32.mrb[0].mxu0
  %v214 = vadd.f32 0.0, %v213
  %v215 = vpop.f32.mrb[0].mxu0
  %v216 = vpop.f32.mrb[0].mxu0
  %v217 = vadd.f32 0.0, %v216
  %v218 = vpop.f32.mrb[0].mxu0
  %219 = vmatprep.mubr.bf16.mxu0 0
  %220 = vmatmul.mubr.bf16.gmra.mrb[0].mxu0 %v130
  %v221 = vpop.f32.mrb[0].mxu0
  %v222 = vadd.f32 0.0, %v221
  %v223 = vpop.f32.mrb[0].mxu0
  %v224 = vpop.f32.mrb[0].mxu0
  %v225 = vadd.f32 0.0, %v224
  %v226 = vpop.f32.mrb[0].mxu0
  %227 = vmatprep.mubr.bf16.mxu0 0
  %228 = vmatmul.mubr.bf16.gmra.mrb[0].mxu0 %v133
  %v229 = vpop.f32.mrb[0].mxu0
  %v230 = vadd.f32 0.0, %v229
  %v231 = vpop.f32.mrb[0].mxu0
  %v232 = vpop.f32.mrb[0].mxu0
  %v233 = vadd.f32 0.0, %v232
  %v234 = vpop.f32.mrb[0].mxu0
  %235 = vdwg.mxu0
  %v252 = vunpack.c.l.b16 %v35
  %v253 = vunpack.c.l.b16 %v36
  %v254 = vunpack.c.l.b16 %v37
  %v255 = vunpack.c.l.b16 %v38
  %v256 = vunpack.c.l.b16 %v39
  %v257 = vunpack.c.l.b16 %v40
  %v258 = vunpack.c.l.b16 %v41
  %v259 = vunpack.c.l.b16 %v42
  %v260 = vunpack.c.l.b16 %v43
  %v261 = vunpack.c.l.b16 %v44
  %v262 = vunpack.c.l.b16 %v45
  %v263 = vunpack.c.l.b16 %v46
  %v264 = vunpack.c.l.b16 %v47
  %v265 = vunpack.c.l.b16 %v48
  %v266 = vunpack.c.l.b16 %v49
  %v267 = vunpack.c.l.b16 %v50
  %v268 = vpack.c.b16 %v253, %v252
  %v269 = vpack.c.b16 %v255, %v254
  %v270 = vpack.c.b16 %v257, %v256
  %v271 = vpack.c.b16 %v259, %v258
  %v272 = vpack.c.b16 %v261, %v260
  %v273 = vpack.c.b16 %v263, %v262
  %v274 = vpack.c.b16 %v265, %v264
  %v275 = vpack.c.b16 %v267, %v266
  %v278 = vunpack.c.l.b16 %v51
  %v279 = vunpack.c.l.b16 %v52
  %v280 = vpack.c.b16 %v279, %v278
  %vm281 = vcmask 97280
  %v283 = vsel %vm281, %v268, 0
  %v286 = vsel %vm281, %v269, 0
  %v289 = vsel %vm281, %v270, 0
  %v292 = vsel %vm281, %v271, 0
  %v295 = vsel %vm281, %v272, 0
  %v298 = vsel %vm281, %v273, 0
  %v301 = vsel %vm281, %v274, 0
  %v304 = vsel %vm281, %v275, 0
  %vm306 = vcmask 1045504
  %v308 = vsel %vm306, %v280, 0
  %310 = vmatprep.subr.bf16.mxu0 0
  %311 = vmatpush1.bf16.msra.mxu0 %v308
  %312 = vmatprep.subr.bf16.mxu0 0
  %313 = vmatpush1.bf16.msra.mxu0 0
  %314 = vmatprep.subr.bf16.mxu0 0
  %315 = vmatpush1.bf16.msra.mxu0 0
  %316 = vmatprep.subr.bf16.mxu0 0
  %317 = vmatpush1.bf16.msra.mxu0 0
  %318 = vmatprep.subr.bf16.mxu0 0
  %319 = vmatpush1.bf16.msra.mxu0 0
  %320 = vmatprep.subr.bf16.mxu0 0
  %321 = vmatpush1.bf16.msra.mxu0 0
  %322 = vmatprep.subr.bf16.mxu0 0
  %323 = vmatpush1.bf16.msra.mxu0 0
  %324 = vmatprep.subr.bf16.mxu0 0
  %325 = vmatpush1.bf16.msra.mxu0 0
  %326 = vmatprep.subr.bf16.mxu0 0
  %327 = vmatpush1.bf16.msra.mxu0 0
  %328 = vmatprep.subr.bf16.mxu0 0
  %329 = vmatpush1.bf16.msra.mxu0 0
  %330 = vmatprep.subr.bf16.mxu0 0
  %331 = vmatpush1.bf16.msra.mxu0 0
  %332 = vmatprep.subr.bf16.mxu0 0
  %333 = vmatpush1.bf16.msra.mxu0 0
  %334 = vmatprep.subr.bf16.mxu0 0
  %335 = vmatpush1.bf16.msra.mxu0 0
  %336 = vmatprep.subr.bf16.mxu0 0
  %337 = vmatpush1.bf16.msra.mxu0 0
  %338 = vmatprep.subr.bf16.mxu0 0
  %339 = vmatpush1.bf16.msra.mxu0 0
  %340 = vmatprep.subr.bf16.mxu0 0
  %341 = vmatpush1.bf16.msra.mxu0 0
  %342 = vmatprep.mubr.bf16.mxu0 0
  %343 = vmatmul.mubr.bf16.gmra.mrb[0].mxu0 %v283
  %v344 = vpop.f32.mrb[0].mxu0
  %v345 = vadd.f32 %v174, %v344
  %v346 = vpop.f32.mrb[0].mxu0
  %v347 = vpop.f32.mrb[0].mxu0
  %v348 = vadd.f32 %v177, %v347
  %v349 = vpop.f32.mrb[0].mxu0
  %350 = vmatprep.mubr.bf16.mxu0 0
  %351 = vmatmul.mubr.bf16.gmra.mrb[0].mxu0 %v286
  %v352 = vpop.f32.mrb[0].mxu0
  %v353 = vadd.f32 %v182, %v352
  %v354 = vpop.f32.mrb[0].mxu0
  %v355 = vpop.f32.mrb[0].mxu0
  %v356 = vadd.f32 %v185, %v355
  %v357 = vpop.f32.mrb[0].mxu0
  %358 = vmatprep.mubr.bf16.mxu0 0
  %359 = vmatmul.mubr.bf16.gmra.mrb[0].mxu0 %v289
  %v360 = vpop.f32.mrb[0].mxu0
  %v361 = vadd.f32 %v190, %v360
  %v362 = vpop.f32.mrb[0].mxu0
  %v363 = vpop.f32.mrb[0].mxu0
  %v364 = vadd.f32 %v193, %v363
  %v365 = vpop.f32.mrb[0].mxu0
  %366 = vmatprep.mubr.bf16.mxu0 0
  %367 = vmatmul.mubr.bf16.gmra.mrb[0].mxu0 %v292
  %v368 = vpop.f32.mrb[0].mxu0
  %v369 = vadd.f32 %v198, %v368
  %v370 = vpop.f32.mrb[0].mxu0
  %v371 = vpop.f32.mrb[0].mxu0
  %v372 = vadd.f32 %v201, %v371
  %v373 = vpop.f32.mrb[0].mxu0
  %374 = vmatprep.mubr.bf16.mxu0 0
  %375 = vmatmul.mubr.bf16.gmra.mrb[0].mxu0 %v295
  %v376 = vpop.f32.mrb[0].mxu0
  %v377 = vadd.f32 %v206, %v376
  %v378 = vpop.f32.mrb[0].mxu0
  %v379 = vpop.f32.mrb[0].mxu0
  %v380 = vadd.f32 %v209, %v379
  %v381 = vpop.f32.mrb[0].mxu0
  %382 = vmatprep.mubr.bf16.mxu0 0
  %383 = vmatmul.mubr.bf16.gmra.mrb[0].mxu0 %v298
  %v384 = vpop.f32.mrb[0].mxu0
  %v385 = vadd.f32 %v214, %v384
  %v386 = vpop.f32.mrb[0].mxu0
  %v387 = vpop.f32.mrb[0].mxu0
  %v388 = vadd.f32 %v217, %v387
  %v389 = vpop.f32.mrb[0].mxu0
  %390 = vmatprep.mubr.bf16.mxu0 0
  %391 = vmatmul.mubr.bf16.gmra.mrb[0].mxu0 %v301
  %v392 = vpop.f32.mrb[0].mxu0
  %v393 = vadd.f32 %v222, %v392
  %v394 = vpop.f32.mrb[0].mxu0
  %v395 = vpop.f32.mrb[0].mxu0
  %v396 = vadd.f32 %v225, %v395
  %v397 = vpop.f32.mrb[0].mxu0
  %398 = vmatprep.mubr.bf16.mxu0 0
  %399 = vmatmul.mubr.bf16.gmra.mrb[0].mxu0 %v304
  %v400 = vpop.f32.mrb[0].mxu0
  %v401 = vadd.f32 %v230, %v400
  %v402 = vpop.f32.mrb[0].mxu0
  %v403 = vpop.f32.mrb[0].mxu0
  %v404 = vadd.f32 %v233, %v403
  %v405 = vpop.f32.mrb[0].mxu0
  %406 = vdwg.mxu0
  %v407 = vld [vmem:[%s4] sm:$0xff]
  %v408 = vld [vmem:[%s4 + $0x8] sm:$0xff]
  %v409 = vld [vmem:[%s4 + $0x10] sm:$0xff]
  %v410 = vld [vmem:[%s4 + $0x18] sm:$0xff]
  %v411 = vld [vmem:[%s4 + $0x20] sm:$0xff]
  %v412 = vld [vmem:[%s4 + $0x28] sm:$0xff]
  %v413 = vld [vmem:[%s4 + $0x30] sm:$0xff]
  %v414 = vld [vmem:[%s4 + $0x38] sm:$0xff]
  %v415 = vld [vmem:[%s4 + $0x40] sm:$0xff]
  %v416 = vld [vmem:[%s4 + $0x48] sm:$0xff]
  %v417 = vld [vmem:[%s4 + $0x50] sm:$0xff]
  %v418 = vld [vmem:[%s4 + $0x58] sm:$0xff]
  %v419 = vld [vmem:[%s4 + $0x60] sm:$0xff]
  %v420 = vld [vmem:[%s4 + $0x68] sm:$0xff]
  %v421 = vld [vmem:[%s4 + $0x70] sm:$0xff]
  %v422 = vld [vmem:[%s4 + $0x78] sm:$0xff]
  %424 = vset.pattern.permute.xlu0 0
  %425 = vperm.xlu0 %424, %v407
  %v426 = vpop.permute.xlu0 %425
  %429 = vset.pattern.permute.xlu0 0
  %430 = vperm.xlu0 %429, %v408
  %v431 = vpop.permute.xlu0 %430
  %434 = vset.pattern.permute.xlu0 0
  %435 = vperm.xlu0 %434, %v409
  %v436 = vpop.permute.xlu0 %435
  %439 = vset.pattern.permute.xlu0 0
  %440 = vperm.xlu0 %439, %v410
  %v441 = vpop.permute.xlu0 %440
  %444 = vset.pattern.permute.xlu0 0
  %445 = vperm.xlu0 %444, %v411
  %v446 = vpop.permute.xlu0 %445
  %449 = vset.pattern.permute.xlu0 0
  %450 = vperm.xlu0 %449, %v412
  %v451 = vpop.permute.xlu0 %450
  %454 = vset.pattern.permute.xlu0 0
  %455 = vperm.xlu0 %454, %v413
  %v456 = vpop.permute.xlu0 %455
  %459 = vset.pattern.permute.xlu0 0
  %460 = vperm.xlu0 %459, %v414
  %v461 = vpop.permute.xlu0 %460
  %464 = vset.pattern.permute.xlu0 0
  %465 = vperm.xlu0 %464, %v415
  %v466 = vpop.permute.xlu0 %465
  %469 = vset.pattern.permute.xlu0 0
  %470 = vperm.xlu0 %469, %v416
  %v471 = vpop.permute.xlu0 %470
  %474 = vset.pattern.permute.xlu0 0
  %475 = vperm.xlu0 %474, %v417
  %v476 = vpop.permute.xlu0 %475
  %479 = vset.pattern.permute.xlu0 0
  %480 = vperm.xlu0 %479, %v418
  %v481 = vpop.permute.xlu0 %480
  %484 = vset.pattern.permute.xlu0 0
  %485 = vperm.xlu0 %484, %v419
  %v486 = vpop.permute.xlu0 %485
  %489 = vset.pattern.permute.xlu0 0
  %490 = vperm.xlu0 %489, %v420
  %v491 = vpop.permute.xlu0 %490
  %494 = vset.pattern.permute.xlu0 0
  %495 = vperm.xlu0 %494, %v421
  %v496 = vpop.permute.xlu0 %495
  %499 = vset.pattern.permute.xlu0 0
  %500 = vperm.xlu0 %499, %v422
  %v501 = vpop.permute.xlu0 %500
  %v503 = vadd.f32 %v345, %v426
  %v504 = vadd.f32 %v348, %v431
  %v505 = vadd.f32 %v353, %v436
  %v506 = vadd.f32 %v356, %v441
  %v507 = vadd.f32 %v361, %v446
  %v508 = vadd.f32 %v364, %v451
  %v509 = vadd.f32 %v369, %v456
  %v510 = vadd.f32 %v372, %v461
  %v511 = vadd.f32 %v377, %v466
  %v512 = vadd.f32 %v380, %v471
  %v513 = vadd.f32 %v385, %v476
  %v514 = vadd.f32 %v388, %v481
  %v515 = vadd.f32 %v393, %v486
  %v516 = vadd.f32 %v396, %v491
  %v517 = vadd.f32 %v401, %v496
  %v518 = vadd.f32 %v404, %v501
  %v519 = vmax.f32 %v503, 0.0
  %v520 = vmax.f32 %v504, 0.0
  %v521 = vmax.f32 %v505, 0.0
  %v522 = vmax.f32 %v506, 0.0
  %v523 = vmax.f32 %v507, 0.0
  %v524 = vmax.f32 %v508, 0.0
  %v525 = vmax.f32 %v509, 0.0
  %v526 = vmax.f32 %v510, 0.0
  %v527 = vmax.f32 %v511, 0.0
  %v528 = vmax.f32 %v512, 0.0
  %v529 = vmax.f32 %v513, 0.0
  %v530 = vmax.f32 %v514, 0.0
  %v531 = vmax.f32 %v515, 0.0
  %v532 = vmax.f32 %v516, 0.0
  %v533 = vmax.f32 %v517, 0.0
  %v534 = vmax.f32 %v518, 0.0
  %v535 = vld [vmem:[%s5] sm:$0xf]
  %v536 = vld [vmem:[%s5 + $0x4] sm:$0xf]
  %v537 = vld [vmem:[%s5 + $0x8] sm:$0xf]
  %v538 = vld [vmem:[%s5 + $0xc] sm:$0xf]
  %v539 = vld [vmem:[%s5 + $0x10] sm:$0xf]
  %v540 = vld [vmem:[%s5 + $0x14] sm:$0xf]
  %v541 = vld [vmem:[%s5 + $0x18] sm:$0xf]
  %v542 = vld [vmem:[%s5 + $0x1c] sm:$0xf]
  %v543 = vld [vmem:[%s5 + $0x20] sm:$0xf]
  %v544 = vld [vmem:[%s5 + $0x24] sm:$0xf]
  %v545 = vld [vmem:[%s5 + $0x28] sm:$0xf]
  %v546 = vld [vmem:[%s5 + $0x2c] sm:$0xf]
  %v547 = vld [vmem:[%s5 + $0x30] sm:$0xf]
  %v548 = vld [vmem:[%s5 + $0x34] sm:$0xf]
  %v549 = vld [vmem:[%s5 + $0x38] sm:$0xf]
  %v550 = vld [vmem:[%s5 + $0x3c] sm:$0xf]
  %v551 = vpack.c.bf16 %v520, %v519
  %v552 = vpack.c.bf16 %v522, %v521
  %v553 = vpack.c.bf16 %v524, %v523
  %v554 = vpack.c.bf16 %v526, %v525
  %v555 = vpack.c.bf16 %v528, %v527
  %v556 = vpack.c.bf16 %v530, %v529
  %v557 = vpack.c.bf16 %v532, %v531
  %v558 = vpack.c.bf16 %v534, %v533
  %v559 = vld [vmem:[%s6] sm:$0xff]
  %v560 = vld [vmem:[%s6 + $0x8] sm:$0xff]
  %v561 = vld [vmem:[%s6 + $0x10] sm:$0xff]
  %v562 = vld [vmem:[%s6 + $0x18] sm:$0xff]
  %v563 = vld [vmem:[%s6 + $0x20] sm:$0xff]
  %v564 = vld [vmem:[%s6 + $0x28] sm:$0xff]
  %v565 = vld [vmem:[%s6 + $0x30] sm:$0xff]
  %v566 = vld [vmem:[%s6 + $0x38] sm:$0xff]
  %v567 = vld [vmem:[%s6 + $0x40] sm:$0xff]
  %v568 = vld [vmem:[%s6 + $0x48] sm:$0xff]
  %v569 = vld [vmem:[%s6 + $0x50] sm:$0xff]
  %v570 = vld [vmem:[%s6 + $0x58] sm:$0xff]
  %v571 = vld [vmem:[%s6 + $0x60] sm:$0xff]
  %v572 = vld [vmem:[%s6 + $0x68] sm:$0xff]
  %v573 = vld [vmem:[%s6 + $0x70] sm:$0xff]
  %v574 = vld [vmem:[%s6 + $0x78] sm:$0xff]
  %576 = vset.pattern.permute.xlu0 0
  %577 = vperm.xlu0 %576, %v559
  %v578 = vpop.permute.xlu0 %577
  %581 = vset.pattern.permute.xlu0 0
  %582 = vperm.xlu0 %581, %v560
  %v583 = vpop.permute.xlu0 %582
  %586 = vset.pattern.permute.xlu0 0
  %587 = vperm.xlu0 %586, %v561
  %v588 = vpop.permute.xlu0 %587
  %591 = vset.pattern.permute.xlu0 0
  %592 = vperm.xlu0 %591, %v562
  %v593 = vpop.permute.xlu0 %592
  %596 = vset.pattern.permute.xlu0 0
  %597 = vperm.xlu0 %596, %v563
  %v598 = vpop.permute.xlu0 %597
  %601 = vset.pattern.permute.xlu0 0
  %602 = vperm.xlu0 %601, %v564
  %v603 = vpop.permute.xlu0 %602
  %606 = vset.pattern.permute.xlu0 0
  %607 = vperm.xlu0 %606, %v565
  %v608 = vpop.permute.xlu0 %607
  %611 = vset.pattern.permute.xlu0 0
  %612 = vperm.xlu0 %611, %v566
  %v613 = vpop.permute.xlu0 %612
  %616 = vset.pattern.permute.xlu0 0
  %617 = vperm.xlu0 %616, %v567
  %v618 = vpop.permute.xlu0 %617
  %621 = vset.pattern.permute.xlu0 0
  %622 = vperm.xlu0 %621, %v568
  %v623 = vpop.permute.xlu0 %622
  %626 = vset.pattern.permute.xlu0 0
  %627 = vperm.xlu0 %626, %v569
  %v628 = vpop.permute.xlu0 %627
  %631 = vset.pattern.permute.xlu0 0
  %632 = vperm.xlu0 %631, %v570
  %v633 = vpop.permute.xlu0 %632
  %636 = vset.pattern.permute.xlu0 0
  %637 = vperm.xlu0 %636, %v571
  %v638 = vpop.permute.xlu0 %637
  %641 = vset.pattern.permute.xlu0 0
  %642 = vperm.xlu0 %641, %v572
  %v643 = vpop.permute.xlu0 %642
  %646 = vset.pattern.permute.xlu0 0
  %647 = vperm.xlu0 %646, %v573
  %v648 = vpop.permute.xlu0 %647
  %651 = vset.pattern.permute.xlu0 0
  %652 = vperm.xlu0 %651, %v574
  %v653 = vpop.permute.xlu0 %652
  %v671 = vunpack.c.l.b16 %v535
  %v672 = vunpack.c.l.b16 %v536
  %v673 = vunpack.c.l.b16 %v537
  %v674 = vunpack.c.l.b16 %v538
  %v675 = vunpack.c.l.b16 %v539
  %v676 = vunpack.c.l.b16 %v540
  %v677 = vunpack.c.l.b16 %v541
  %v678 = vunpack.c.l.b16 %v542
  %v679 = vunpack.c.l.b16 %v543
  %v680 = vunpack.c.l.b16 %v544
  %v681 = vunpack.c.l.b16 %v545
  %v682 = vunpack.c.l.b16 %v546
  %v683 = vunpack.c.l.b16 %v547
  %v684 = vunpack.c.l.b16 %v548
  %v685 = vunpack.c.l.b16 %v549
  %v686 = vunpack.c.l.b16 %v550
  %v687 = vpack.c.b16 %v672, %v671
  %v688 = vpack.c.b16 %v674, %v673
  %v689 = vpack.c.b16 %v676, %v675
  %v690 = vpack.c.b16 %v678, %v677
  %v691 = vpack.c.b16 %v680, %v679
  %v692 = vpack.c.b16 %v682, %v681
  %v693 = vpack.c.b16 %v684, %v683
  %v694 = vpack.c.b16 %v686, %v685
  %703 = vmatprep.subr.bf16.mxu0 0
  %704 = vmatpush1.bf16.msra.mxu0 %v551
  %705 = vmatprep.subr.bf16.mxu0 0
  %706 = vmatpush1.bf16.msra.mxu0 %v552
  %707 = vmatprep.subr.bf16.mxu0 0
  %708 = vmatpush1.bf16.msra.mxu0 %v553
  %709 = vmatprep.subr.bf16.mxu0 0
  %710 = vmatpush1.bf16.msra.mxu0 %v554
  %711 = vmatprep.subr.bf16.mxu0 0
  %712 = vmatpush1.bf16.msra.mxu0 %v555
  %713 = vmatprep.subr.bf16.mxu0 0
  %714 = vmatpush1.bf16.msra.mxu0 %v556
  %715 = vmatprep.subr.bf16.mxu0 0
  %716 = vmatpush1.bf16.msra.mxu0 %v557
  %717 = vmatprep.subr.bf16.mxu0 0
  %718 = vmatpush1.bf16.msra.mxu0 %v558
  %719 = vmatprep.subr.bf16.mxu0 0
  %720 = vmatpush1.bf16.msra.mxu0 0
  %721 = vmatprep.subr.bf16.mxu0 0
  %722 = vmatpush1.bf16.msra.mxu0 0
  %723 = vmatprep.subr.bf16.mxu0 0
  %724 = vmatpush1.bf16.msra.mxu0 0
  %725 = vmatprep.subr.bf16.mxu0 0
  %726 = vmatpush1.bf16.msra.mxu0 0
  %727 = vmatprep.subr.bf16.mxu0 0
  %728 = vmatpush1.bf16.msra.mxu0 0
  %729 = vmatprep.subr.bf16.mxu0 0
  %730 = vmatpush1.bf16.msra.mxu0 0
  %731 = vmatprep.subr.bf16.mxu0 0
  %732 = vmatpush1.bf16.msra.mxu0 0
  %733 = vmatprep.subr.bf16.mxu0 0
  %734 = vmatpush1.bf16.msra.mxu0 0
  %735 = vmatprep.mubr.bf16.mxu0 0
  %736 = vmatmul.mubr.bf16.gmra.mrb[0].mxu0 %v687
  %v737 = vpop.f32.mrb[0].mxu0
  %v738 = vadd.f32 %v578, %v737
  %v739 = vpop.f32.mrb[0].mxu0
  %v740 = vpop.f32.mrb[0].mxu0
  %v741 = vadd.f32 %v583, %v740
  %v742 = vpop.f32.mrb[0].mxu0
  %743 = vmatprep.mubr.bf16.mxu0 0
  %744 = vmatmul.mubr.bf16.gmra.mrb[0].mxu0 %v688
  %v745 = vpop.f32.mrb[0].mxu0
  %v746 = vadd.f32 %v588, %v745
  %v747 = vpop.f32.mrb[0].mxu0
  %v748 = vpop.f32.mrb[0].mxu0
  %v749 = vadd.f32 %v593, %v748
  %v750 = vpop.f32.mrb[0].mxu0
  %751 = vmatprep.mubr.bf16.mxu0 0
  %752 = vmatmul.mubr.bf16.gmra.mrb[0].mxu0 %v689
  %v753 = vpop.f32.mrb[0].mxu0
  %v754 = vadd.f32 %v598, %v753
  %v755 = vpop.f32.mrb[0].mxu0
  %v756 = vpop.f32.mrb[0].mxu0
  %v757 = vadd.f32 %v603, %v756
  %v758 = vpop.f32.mrb[0].mxu0
  %759 = vmatprep.mubr.bf16.mxu0 0
  %760 = vmatmul.mubr.bf16.gmra.mrb[0].mxu0 %v690
  %v761 = vpop.f32.mrb[0].mxu0
  %v762 = vadd.f32 %v608, %v761
  %v763 = vpop.f32.mrb[0].mxu0
  %v764 = vpop.f32.mrb[0].mxu0
  %v765 = vadd.f32 %v613, %v764
  %v766 = vpop.f32.mrb[0].mxu0
  %767 = vmatprep.mubr.bf16.mxu0 0
  %768 = vmatmul.mubr.bf16.gmra.mrb[0].mxu0 %v691
  %v769 = vpop.f32.mrb[0].mxu0
  %v770 = vadd.f32 %v618, %v769
  %v771 = vpop.f32.mrb[0].mxu0
  %v772 = vpop.f32.mrb[0].mxu0
  %v773 = vadd.f32 %v623, %v772
  %v774 = vpop.f32.mrb[0].mxu0
  %775 = vmatprep.mubr.bf16.mxu0 0
  %776 = vmatmul.mubr.bf16.gmra.mrb[0].mxu0 %v692
  %v777 = vpop.f32.mrb[0].mxu0
  %v778 = vadd.f32 %v628, %v777
  %v779 = vpop.f32.mrb[0].mxu0
  %v780 = vpop.f32.mrb[0].mxu0
  %v781 = vadd.f32 %v633, %v780
  %v782 = vpop.f32.mrb[0].mxu0
  %783 = vmatprep.mubr.bf16.mxu0 0
  %784 = vmatmul.mubr.bf16.gmra.mrb[0].mxu0 %v693
  %v785 = vpop.f32.mrb[0].mxu0
  %v786 = vadd.f32 %v638, %v785
  %v787 = vpop.f32.mrb[0].mxu0
  %v788 = vpop.f32.mrb[0].mxu0
  %v789 = vadd.f32 %v643, %v788
  %v790 = vpop.f32.mrb[0].mxu0
  %791 = vmatprep.mubr.bf16.mxu0 0
  %792 = vmatmul.mubr.bf16.gmra.mrb[0].mxu0 %v694
  %v793 = vpop.f32.mrb[0].mxu0
  %v794 = vadd.f32 %v648, %v793
  %v795 = vpop.f32.mrb[0].mxu0
  %v796 = vpop.f32.mrb[0].mxu0
  %v797 = vadd.f32 %v653, %v796
  %v798 = vpop.f32.mrb[0].mxu0
  %799 = vdwg.mxu0
  %v800 = vmax.f32 %v738, 0.0
  %v801 = vmax.f32 %v741, 0.0
  %v802 = vmax.f32 %v746, 0.0
  %v803 = vmax.f32 %v749, 0.0
  %v804 = vmax.f32 %v754, 0.0
  %v805 = vmax.f32 %v757, 0.0
  %v806 = vmax.f32 %v762, 0.0
  %v807 = vmax.f32 %v765, 0.0
  %v808 = vmax.f32 %v770, 0.0
  %v809 = vmax.f32 %v773, 0.0
  %v810 = vmax.f32 %v778, 0.0
  %v811 = vmax.f32 %v781, 0.0
  %v812 = vmax.f32 %v786, 0.0
  %v813 = vmax.f32 %v789, 0.0
  %v814 = vmax.f32 %v794, 0.0
  %v815 = vmax.f32 %v797, 0.0
  %v816 = vld [vmem:[%s7] sm:$0xff]
  %v817 = vld [vmem:[%s7 + $0x8] sm:$0xff]
  %v818 = vld [vmem:[%s7 + $0x10] sm:$0xff]
  %v819 = vld [vmem:[%s7 + $0x18] sm:$0xff]
  %v820 = vld [vmem:[%s7 + $0x20] sm:$0xff]
  %v821 = vld [vmem:[%s7 + $0x28] sm:$0xff]
  %v822 = vld [vmem:[%s7 + $0x30] sm:$0xff]
  %v823 = vld [vmem:[%s7 + $0x38] sm:$0xff]
  %v824 = vld [vmem:[%s7 + $0x40] sm:$0xff]
  %v825 = vld [vmem:[%s7 + $0x48] sm:$0xff]
  %v826 = vld [vmem:[%s7 + $0x50] sm:$0xff]
  %v827 = vld [vmem:[%s7 + $0x58] sm:$0xff]
  %v828 = vld [vmem:[%s7 + $0x60] sm:$0xff]
  %v829 = vld [vmem:[%s7 + $0x68] sm:$0xff]
  %v830 = vld [vmem:[%s7 + $0x70] sm:$0xff]
  %v831 = vld [vmem:[%s7 + $0x78] sm:$0xff]
  %833 = vset.pattern.permute.xlu0 0
  %834 = vperm.xlu0 %833, %v816
  %v835 = vpop.permute.xlu0 %834
  %838 = vset.pattern.permute.xlu0 0
  %839 = vperm.xlu0 %838, %v817
  %v840 = vpop.permute.xlu0 %839
  %843 = vset.pattern.permute.xlu0 0
  %844 = vperm.xlu0 %843, %v818
  %v845 = vpop.permute.xlu0 %844
  %848 = vset.pattern.permute.xlu0 0
  %849 = vperm.xlu0 %848, %v819
  %v850 = vpop.permute.xlu0 %849
  %853 = vset.pattern.permute.xlu0 0
  %854 = vperm.xlu0 %853, %v820
  %v855 = vpop.permute.xlu0 %854
  %858 = vset.pattern.permute.xlu0 0
  %859 = vperm.xlu0 %858, %v821
  %v860 = vpop.permute.xlu0 %859
  %863 = vset.pattern.permute.xlu0 0
  %864 = vperm.xlu0 %863, %v822
  %v865 = vpop.permute.xlu0 %864
  %868 = vset.pattern.permute.xlu0 0
  %869 = vperm.xlu0 %868, %v823
  %v870 = vpop.permute.xlu0 %869
  %873 = vset.pattern.permute.xlu0 0
  %874 = vperm.xlu0 %873, %v824
  %v875 = vpop.permute.xlu0 %874
  %878 = vset.pattern.permute.xlu0 0
  %879 = vperm.xlu0 %878, %v825
  %v880 = vpop.permute.xlu0 %879
  %883 = vset.pattern.permute.xlu0 0
  %884 = vperm.xlu0 %883, %v826
  %v885 = vpop.permute.xlu0 %884
  %888 = vset.pattern.permute.xlu0 0
  %889 = vperm.xlu0 %888, %v827
  %v890 = vpop.permute.xlu0 %889
  %893 = vset.pattern.permute.xlu0 0
  %894 = vperm.xlu0 %893, %v828
  %v895 = vpop.permute.xlu0 %894
  %898 = vset.pattern.permute.xlu0 0
  %899 = vperm.xlu0 %898, %v829
  %v900 = vpop.permute.xlu0 %899
  %903 = vset.pattern.permute.xlu0 0
  %904 = vperm.xlu0 %903, %v830
  %v905 = vpop.permute.xlu0 %904
  %908 = vset.pattern.permute.xlu0 0
  %909 = vperm.xlu0 %908, %v831
  %v910 = vpop.permute.xlu0 %909
  %v912 = vmul.f32 %v835, %v800
  %v913 = vmul.f32 %v840, %v801
  %v914 = vmul.f32 %v845, %v802
  %v915 = vmul.f32 %v850, %v803
  %v916 = vmul.f32 %v855, %v804
  %v917 = vmul.f32 %v860, %v805
  %v918 = vmul.f32 %v865, %v806
  %v919 = vmul.f32 %v870, %v807
  %v920 = vmul.f32 %v875, %v808
  %v921 = vmul.f32 %v880, %v809
  %v922 = vmul.f32 %v885, %v810
  %v923 = vmul.f32 %v890, %v811
  %v924 = vmul.f32 %v895, %v812
  %v925 = vmul.f32 %v900, %v813
  %v926 = vmul.f32 %v905, %v814
  %v927 = vmul.f32 %v910, %v815
  %v928 = vadd.f32 %v912, %v913
  %v929 = vadd.f32 %v928, %v914
  %v930 = vadd.f32 %v929, %v915
  %v931 = vadd.f32 %v930, %v916
  %v932 = vadd.f32 %v931, %v917
  %v933 = vadd.f32 %v932, %v918
  %v934 = vadd.f32 %v933, %v919
  %v935 = vadd.f32 %v934, %v920
  %v936 = vadd.f32 %v935, %v921
  %v937 = vadd.f32 %v936, %v922
  %v938 = vadd.f32 %v937, %v923
  %v939 = vadd.f32 %v938, %v924
  %v940 = vadd.f32 %v939, %v925
  %v941 = vadd.f32 %v940, %v926
  %v942 = vadd.f32 %v941, %v927
  %v943 = vrot.slane %v942, 4
  %v944 = vadd.f32 %v942, %v943
  %v945 = vrot.slane %v944, 2
  %v946 = vadd.f32 %v944, %v945
  %v947 = vrot.slane %v946, 1
  %v948 = vadd.f32 %v946, %v947
  %v949 = vld [vmem:[#allocation2] sm:$0x1]
  %951 = vset.pattern.permute.xlu0 0
  %952 = vperm.xlu0 %951, %v949
  %v953 = vpop.permute.xlu0 %952
  %v955 = vlaneseq
  %v956 = vshrl.u32 %v955, 7
  %v957 = vsub.s32 0, %v956
  %v958 = vrot.slane %v953, %v957
  %v959 = vadd.f32 %v948, %v958
  %960 = vst [vmem:[%s9] sm:$0x1] %v959
  // Predicated region
  $region38: #{critic_forward.1} parent=0 // pred_check
    _
  $region39: #{critic_forward.1} parent=0 // pred_check_branch
    %962 = sbr.rel (0) target = $region41
  $region40: #{critic_forward.1} parent=0 // pred_region
    _
  $region41: #{critic_forward.1} parent=0 // pred_fallthru
    _
  // Predicated region
  $region42: #{critic_forward.1} parent=0 // pred_check
    _
  $region43: #{critic_forward.1} parent=0 // pred_check_branch
    %964 = sbr.rel (0) target = $region45
  $region44: #{critic_forward.1} parent=0 // pred_region
    _
  $region45: #{critic_forward.1} parent=0 // pred_fallthru
    _

</llo_original>
